<compile_context>
chip_gen: v7x
topology: tpu7x:2x2x1
jax: 0.10.0
libtpu: 0.0.40
codegen_flags: <defaults>
</compile_context>

<pallas_src>
import jax
import jax.numpy as jnp
from jax.experimental import pallas as pl
from jax.experimental.pallas import tpu as pltpu

BN_EPS = 1e-5        # torch.nn.BatchNorm1d default
NORM_EPS = 1e-12     # guards rsqrt against an all-zero row after BN+ReLU
D1 = 256             # first MLP width  (Discriminator spec: [hidden, 256, 128])
D2 = 128             # second MLP width
VMEM_LIMIT = 64 * 1024 * 1024   # safe on v5e/v6e/v7x; well above the 16/32 MiB defaults


# ----------------------------------------------------------------------------
# Stage 1: per-branch MLP + BatchNorm + ReLU + row L2 normalization
# ----------------------------------------------------------------------------
def _bn_train(h, gamma, beta):
    """Training-mode BatchNorm1d (two-pass stats, folded scale/shift)."""
    mu = jnp.mean(h, axis=0, keepdims=True)
    var = jnp.mean((h - mu) * (h - mu), axis=0, keepdims=True)   # biased var
    scale = gamma * jax.lax.rsqrt(var + BN_EPS)                  # EUP rsqrt
    shift = beta - mu * scale
    return h * scale + shift


def _mlp_branch_kernel(x_ref, w1_ref, g1_ref, be1_ref,
                       w2_ref, g2_ref, be2_ref, out_ref):
    # One full MLP branch per grid step (branch axis squeezed out of all refs).
    x = x_ref[...].astype(jnp.float32)                                 # [B, H]
    h1 = jnp.dot(x, w1_ref[...], preferred_element_type=jnp.float32)   # [B, D1]
    h1 = jnp.maximum(_bn_train(h1, g1_ref[...], be1_ref[...]), 0.0)
    h2 = jnp.dot(h1, w2_ref[...], preferred_element_type=jnp.float32)  # [B, D2]
    h2 = _bn_train(h2, g2_ref[...], be2_ref[...])
    # Row-wise L2 normalization via rsqrt (EUP slot), no divides.
    inv = jax.lax.rsqrt(jnp.sum(h2 * h2, axis=1, keepdims=True) + NORM_EPS)
    out_ref[...] = (h2 * inv).astype(out_ref.dtype)


# ----------------------------------------------------------------------------
# Stage 2: logits matmul  (normalized h_a) @ (normalized h_b)^T
#   Row-tiled only; h_b stays VMEM-resident across the whole grid.
# ----------------------------------------------------------------------------
def _logits_kernel(ha_ref, hb_ref, out_ref):
    out_ref[...] = jax.lax.dot_general(
        ha_ref[...], hb_ref[...],
        dimension_numbers=(((1,), (1,)), ((), ())),   # contract feature dims
        preferred_element_type=jnp.float32,
    ).astype(out_ref.dtype)


def discriminator_forward(f_a, f_b, params):
    """params: dict with keys 'a' and 'b', each a tuple
       (w1, b1, g1, be1, w2, b2, g2, be2); weights stored [in, out].
       Linear biases b1/b2 never reach the kernel (they cancel under
       training-mode BatchNorm)."""
    B, H = f_a.shape
    Bb, Hb = f_b.shape
    # Branch-stacked stage 1 assumes matching shapes, which is how the
    # Discriminator is used (B x B contrastive logits).
    assert B == Bb and H == Hb, "stage 1 assumes matching f_a / f_b shapes"

    w1a, _, g1a, be1a, w2a, _, g2a, be2a = params["a"]
    w1b, _, g1b, be1b, w2b, _, g2b, be2b = params["b"]

    # Stack the two branches along a leading axis of size 2 (tiny copies;
    # each grid step / TensorCore processes one branch).
    x = jnp.stack([f_a, f_b])            # [2, B, H]
    w1 = jnp.stack([w1a, w1b])           # [2, H, D1]
    g1 = jnp.stack([g1a, g1b])           # [2, 1, D1]
    be1 = jnp.stack([be1a, be1b])
    w2 = jnp.stack([w2a, w2b])           # [2, D1, D2]
    g2 = jnp.stack([g2a, g2b])           # [2, 1, D2]
    be2 = jnp.stack([be2a, be2b])

    def branch_spec(shape):
        # Leading branch dim is squeezed out of the kernel ref.
        return pl.BlockSpec((None,) + shape, lambda i: (i,) + (0,) * len(shape))

    # ---- stage 1: one MLP branch per grid step, megacore-parallel on v7x.
    # (BN statistics need the whole batch, so the batch dim is not tiled.)
    h_n = pl.pallas_call(
        _mlp_branch_kernel,
        out_shape=jax.ShapeDtypeStruct((2, B, D2), jnp.float32),
        grid=(2,),
        in_specs=[branch_spec((B, H)),
                  branch_spec((H, D1)), branch_spec((1, D1)), branch_spec((1, D1)),
                  branch_spec((D1, D2)), branch_spec((1, D2)), branch_spec((1, D2))],
        out_specs=branch_spec((B, D2)),
        compiler_params=pltpu.CompilerParams(
            dimension_semantics=("parallel",),
            vmem_limit_bytes=VMEM_LIMIT),
    )(x, w1, g1, be1, w2, g2, be2)

    # ---- stage 2: row-tiled logits matmul; hb (branch 1 of h_n) stays
    # VMEM-resident for the whole grid (its block index never changes, so it
    # is DMA'd exactly once).  Output tiles are lane-dense (tm, Bb) slabs.
    tm = B if B <= 512 else 512
    # Keep the double-buffered output tile within ~32 MiB of VMEM.
    while tm > 8 and 2 * tm * Bb * 4 > (32 << 20):
        tm //= 2
    grid_m = pl.cdiv(B, tm)

    return pl.pallas_call(
        _logits_kernel,
        out_shape=jax.ShapeDtypeStruct((B, Bb), jnp.float32),
        grid=(grid_m,),
        in_specs=[pl.BlockSpec((None, tm, D2), lambda i: (0, i, 0)),   # h_a rows
                  pl.BlockSpec((None, Bb, D2), lambda i: (1, 0, 0))],  # h_b (resident)
        out_specs=pl.BlockSpec((tm, Bb), lambda i: (i, 0)),
        compiler_params=pltpu.CompilerParams(
            dimension_semantics=("parallel",),
            vmem_limit_bytes=VMEM_LIMIT),
    )(h_n, h_n)


# ----------------------------------------------------------------------------
# Parameter init (PyTorch-style) and pure-JAX reference with exact PyTorch math
# ----------------------------------------------------------------------------
def init_mlp_params(key, sizes):
    """Linear ~ U(-1/sqrt(fan_in), 1/sqrt(fan_in)); BN gamma=1, beta=0.
    Weights stored as [in, out]; biases/gammas/betas as [1, out]."""
    ks = jax.random.split(key, 4)
    d0, d1, d2 = sizes
    lim1 = 1.0 / jnp.sqrt(d0)
    lim2 = 1.0 / jnp.sqrt(d1)
    w1 = jax.random.uniform(ks[0], (d0, d1), jnp.float32, -lim1, lim1)
    b1 = jax.random.uniform(ks[1], (1, d1), jnp.float32, -lim1, lim1)
    g1 = jnp.ones((1, d1), jnp.float32)
    be1 = jnp.zeros((1, d1), jnp.float32)
    w2 = jax.random.uniform(ks[2], (d1, d2), jnp.float32, -lim2, lim2)
    b2 = jax.random.uniform(ks[3], (1, d2), jnp.float32, -lim2, lim2)
    g2 = jnp.ones((1, d2), jnp.float32)
    be2 = jnp.zeros((1, d2), jnp.float32)
    return (w1, b1, g1, be1, w2, b2, g2, be2)


def _reference_mlp(x, w1, b1, g1, be1, w2, b2, g2, be2):
    h = x @ w1 + b1
    mu = jnp.mean(h, axis=0, keepdims=True)
    var = jnp.mean((h - mu) ** 2, axis=0, keepdims=True)
    h = (h - mu) / jnp.sqrt(var + BN_EPS) * g1 + be1
    h = jnp.maximum(h, 0.0)
    h = h @ w2 + b2
    mu = jnp.mean(h, axis=0, keepdims=True)
    var = jnp.mean((h - mu) ** 2, axis=0, keepdims=True)
    h = (h - mu) / jnp.sqrt(var + BN_EPS) * g2 + be2
    return h


def reference_forward(f_a, f_b, params):
    h_a = _reference_mlp(f_a.astype(jnp.float32), *params["a"])
    h_b = _reference_mlp(f_b.astype(jnp.float32), *params["b"])
    na = jnp.sqrt(jnp.sum(h_a * h_a, axis=1, keepdims=True))
    nb = jnp.sqrt(jnp.sum(h_b * h_b, axis=1, keepdims=True))
    return (h_a / na) @ (h_b / nb).T


if __name__ == "__main__":
    hidden_dim = 32
    batch = 8

    key = jax.random.PRNGKey(0)
    k_fa, k_fb, k_pa, k_pb = jax.random.split(key, 4)

    f_a = jax.random.normal(k_fa, (batch, hidden_dim), jnp.float32)
    f_b = jax.random.normal(k_fb, (batch, hidden_dim), jnp.float32)

    params = {
        "a": init_mlp_params(k_pa, [hidden_dim, D1, D2]),
        "b": init_mlp_params(k_pb, [hidden_dim, D1, D2]),
    }

    logits = jax.jit(discriminator_forward)(f_a, f_b, params)
    jax.block_until_ready(logits)

    ref = reference_forward(f_a, f_b, params)
    assert logits.shape == (batch, batch)
    assert jnp.allclose(logits, ref, rtol=1e-3, atol=1e-3), "mismatch vs reference"

    print("KERNEL_OK")
</pallas_src>

<mosaic_0001>
module attributes {stable_mosaic.version = 11 : i64} {
  func.func @_logits_kernel(%arg0: i32, %arg1: memref<1x8x128xf32, #tpu.memory_space<vmem>>, %arg2: memref<1x8x128xf32, #tpu.memory_space<vmem>>, %arg3: memref<8x8xf32, #tpu.memory_space<vmem>>) attributes {dimension_semantics = [#tpu.dimension_semantics<parallel>], iteration_bounds = array<i64: 1>, scalar_prefetch = 0 : i64, scratch_operands = 0 : i64, tpu.core_type = #tpu.core_type<tc>, window_params = [{transform_indices = @transform_0, window_bounds = array<i64: 1, 8, 128>}, {transform_indices = @transform_1, window_bounds = array<i64: 1, 8, 128>}, {transform_indices = @transform_2, window_bounds = array<i64: 8, 8>}]} {
    %c0 = arith.constant 0 : index
    %c0_0 = arith.constant 0 : index
    %c0_1 = arith.constant 0 : index
    %0 = vector.load %arg1[%c0, %c0_0, %c0_1] : memref<1x8x128xf32, #tpu.memory_space<vmem>>, vector<1x8x128xf32>
    %1 = vector.shape_cast %0 : vector<1x8x128xf32> to vector<8x128xf32>
    %c0_2 = arith.constant 0 : index
    %c0_3 = arith.constant 0 : index
    %c0_4 = arith.constant 0 : index
    %2 = vector.load %arg2[%c0_2, %c0_3, %c0_4] : memref<1x8x128xf32, #tpu.memory_space<vmem>>, vector<1x8x128xf32>
    %3 = vector.shape_cast %2 : vector<1x8x128xf32> to vector<8x128xf32>
    %cst = arith.constant dense<0.000000e+00> : vector<8x8xf32>
    %4 = tpu.matmul %1, %3, %cst {dimension_numbers = #tpu.dot_dimension_numbers<[1], [1], [0], [0], [0, 0, 1, 0], [], []>} : vector<8x128xf32>, vector<8x128xf32>, vector<8x8xf32> -> vector<8x8xf32>
    %c0_5 = arith.constant 0 : index
    %c0_6 = arith.constant 0 : index
    %5 = vector.load %arg3[%c0_5, %c0_6] : memref<8x8xf32, #tpu.memory_space<vmem>>, vector<8x8xf32>
    tpu.vector_store %arg3[%c0_5, %c0_6], %4 {strides = array<i32>} : memref<8x8xf32, #tpu.memory_space<vmem>>, vector<8x8xf32>,
    return
  }
  func.func @transform_0(%arg0: i32) -> (i32, i32, i32) {
    %c0_i32 = arith.constant 0 : i32
    %c0_i32_0 = arith.constant 0 : i32
    %c0_i32_1 = arith.constant 0 : i32
    return %c0_i32, %arg0, %c0_i32_0 : i32, i32, i32
  }
  func.func @transform_1(%arg0: i32) -> (i32, i32, i32) {
    %c1_i32 = arith.constant 1 : i32
    %c0_i32 = arith.constant 0 : i32
    %c0_i32_0 = arith.constant 0 : i32
    %c0_i32_1 = arith.constant 0 : i32
    return %c1_i32, %c0_i32, %c0_i32_0 : i32, i32, i32
  }
  func.func @transform_2(%arg0: i32) -> (i32, i32) {
    %c0_i32 = arith.constant 0 : i32
    %c0_i32_0 = arith.constant 0 : i32
    return %arg0, %c0_i32 : i32, i32
  }
}

module attributes {stable_mosaic.version = 11 : i64} {
  func.func @_mlp_branch_kernel(%arg0: i32, %arg1: memref<1x8x32xf32, #tpu.memory_space<vmem>>, %arg2: memref<1x32x256xf32, #tpu.memory_space<vmem>>, %arg3: memref<1x1x256xf32, #tpu.memory_space<vmem>>, %arg4: memref<1x1x256xf32, #tpu.memory_space<vmem>>, %arg5: memref<1x256x128xf32, #tpu.memory_space<vmem>>, %arg6: memref<1x1x128xf32, #tpu.memory_space<vmem>>, %arg7: memref<1x1x128xf32, #tpu.memory_space<vmem>>, %arg8: memref<1x8x128xf32, #tpu.memory_space<vmem>>) attributes {dimension_semantics = [#tpu.dimension_semantics<parallel>], iteration_bounds = array<i64: 2>, scalar_prefetch = 0 : i64, scratch_operands = 0 : i64, tpu.core_type = #tpu.core_type<tc>, window_params = [{transform_indices = @transform_0, window_bounds = array<i64: 1, 8, 32>}, {transform_indices = @transform_1, window_bounds = array<i64: 1, 32, 256>}, {transform_indices = @transform_2, window_bounds = array<i64: 1, 1, 256>}, {transform_indices = @transform_3, window_bounds = array<i64: 1, 1, 256>}, {transform_indices = @transform_4, window_bounds = array<i64: 1, 256, 128>}, {transform_indices = @transform_5, window_bounds = array<i64: 1, 1, 128>}, {transform_indices = @transform_6, window_bounds = array<i64: 1, 1, 128>}, {transform_indices = @transform_7, window_bounds = array<i64: 1, 8, 128>}]} {
    %c0 = arith.constant 0 : index
    %c0_0 = arith.constant 0 : index
    %c0_1 = arith.constant 0 : index
    %0 = vector.load %arg1[%c0, %c0_0, %c0_1] : memref<1x8x32xf32, #tpu.memory_space<vmem>>, vector<1x8x32xf32>
    %1 = vector.shape_cast %0 : vector<1x8x32xf32> to vector<8x32xf32>
    %c0_2 = arith.constant 0 : index
    %c0_3 = arith.constant 0 : index
    %c0_4 = arith.constant 0 : index
    %2 = vector.load %arg2[%c0_2, %c0_3, %c0_4] : memref<1x32x256xf32, #tpu.memory_space<vmem>>, vector<1x32x256xf32>
    %3 = vector.shape_cast %2 : vector<1x32x256xf32> to vector<32x256xf32>
    %cst = arith.constant dense<0.000000e+00> : vector<8x256xf32>
    %4 = tpu.matmul %1, %3, %cst {dimension_numbers = #tpu.dot_dimension_numbers<[1], [0], [0], [1], [0, 0, 1, 1], [], []>} : vector<8x32xf32>, vector<32x256xf32>, vector<8x256xf32> -> vector<8x256xf32>
    %c0_5 = arith.constant 0 : index
    %c0_6 = arith.constant 0 : index
    %c0_7 = arith.constant 0 : index
    %5 = vector.load %arg3[%c0_5, %c0_6, %c0_7] : memref<1x1x256xf32, #tpu.memory_space<vmem>>, vector<1x1x256xf32>
    %6 = vector.shape_cast %5 : vector<1x1x256xf32> to vector<1x256xf32>
    %c0_8 = arith.constant 0 : index
    %c0_9 = arith.constant 0 : index
    %c0_10 = arith.constant 0 : index
    %7 = vector.load %arg4[%c0_8, %c0_9, %c0_10] : memref<1x1x256xf32, #tpu.memory_space<vmem>>, vector<1x1x256xf32>
    %8 = vector.shape_cast %7 : vector<1x1x256xf32> to vector<1x256xf32>
    %cst_11 = arith.constant dense<0.000000e+00> : vector<256xf32>
    %9 = vector.multi_reduction <add>, %4, %cst_11 [0] : vector<8x256xf32> to vector<256xf32>
    %10 = vector.shape_cast %9 : vector<256xf32> to vector<1x256xf32>
    %cst_12 = arith.constant 8.000000e+00 : f32
    %11 = vector.broadcast %cst_12 : f32 to vector<1x256xf32>
    %12 = arith.divf %10, %11 : vector<1x256xf32>
    %13 = vector.broadcast %12 : vector<1x256xf32> to vector<8x256xf32>
    %14 = arith.subf %4, %13 : vector<8x256xf32>
    %15 = vector.broadcast %12 : vector<1x256xf32> to vector<8x256xf32>
    %16 = arith.subf %4, %15 : vector<8x256xf32>
    %17 = arith.mulf %14, %16 : vector<8x256xf32>
    %cst_13 = arith.constant dense<0.000000e+00> : vector<256xf32>
    %18 = vector.multi_reduction <add>, %17, %cst_13 [0] : vector<8x256xf32> to vector<256xf32>
    %19 = vector.shape_cast %18 : vector<256xf32> to vector<1x256xf32>
    %cst_14 = arith.constant 8.000000e+00 : f32
    %20 = vector.broadcast %cst_14 : f32 to vector<1x256xf32>
    %21 = arith.divf %19, %20 : vector<1x256xf32>
    %cst_15 = arith.constant 9.99999974E-6 : f32
    %22 = vector.broadcast %cst_15 : f32 to vector<1x256xf32>
    %23 = arith.addf %21, %22 : vector<1x256xf32>
    %24 = math.rsqrt %23 : vector<1x256xf32>
    %25 = arith.mulf %6, %24 : vector<1x256xf32>
    %26 = arith.mulf %12, %25 : vector<1x256xf32>
    %27 = arith.subf %8, %26 : vector<1x256xf32>
    %28 = vector.broadcast %25 : vector<1x256xf32> to vector<8x256xf32>
    %29 = arith.mulf %4, %28 : vector<8x256xf32>
    %30 = vector.broadcast %27 : vector<1x256xf32> to vector<8x256xf32>
    %31 = arith.addf %29, %30 : vector<8x256xf32>
    %cst_16 = arith.constant 0.000000e+00 : f32
    %32 = vector.broadcast %cst_16 : f32 to vector<8x256xf32>
    %33 = arith.maximumf %31, %32 : vector<8x256xf32>
    %c0_17 = arith.constant 0 : index
    %c0_18 = arith.constant 0 : index
    %c0_19 = arith.constant 0 : index
    %34 = vector.load %arg5[%c0_17, %c0_18, %c0_19] : memref<1x256x128xf32, #tpu.memory_space<vmem>>, vector<1x256x128xf32>
    %35 = vector.shape_cast %34 : vector<1x256x128xf32> to vector<256x128xf32>
    %cst_20 = arith.constant dense<0.000000e+00> : vector<8x128xf32>
    %36 = tpu.matmul %33, %35, %cst_20 {dimension_numbers = #tpu.dot_dimension_numbers<[1], [0], [0], [1], [0, 0, 1, 1], [], []>} : vector<8x256xf32>, vector<256x128xf32>, vector<8x128xf32> -> vector<8x128xf32>
    %c0_21 = arith.constant 0 : index
    %c0_22 = arith.constant 0 : index
    %c0_23 = arith.constant 0 : index
    %37 = vector.load %arg6[%c0_21, %c0_22, %c0_23] : memref<1x1x128xf32, #tpu.memory_space<vmem>>, vector<1x1x128xf32>
    %38 = vector.shape_cast %37 : vector<1x1x128xf32> to vector<1x128xf32>
    %c0_24 = arith.constant 0 : index
    %c0_25 = arith.constant 0 : index
    %c0_26 = arith.constant 0 : index
    %39 = vector.load %arg7[%c0_24, %c0_25, %c0_26] : memref<1x1x128xf32, #tpu.memory_space<vmem>>, vector<1x1x128xf32>
    %40 = vector.shape_cast %39 : vector<1x1x128xf32> to vector<1x128xf32>
    %cst_27 = arith.constant dense<0.000000e+00> : vector<128xf32>
    %41 = vector.multi_reduction <add>, %36, %cst_27 [0] : vector<8x128xf32> to vector<128xf32>
    %42 = vector.shape_cast %41 : vector<128xf32> to vector<1x128xf32>
    %cst_28 = arith.constant 8.000000e+00 : f32
    %43 = vector.broadcast %cst_28 : f32 to vector<1x128xf32>
    %44 = arith.divf %42, %43 : vector<1x128xf32>
    %45 = vector.broadcast %44 : vector<1x128xf32> to vector<8x128xf32>
    %46 = arith.subf %36, %45 : vector<8x128xf32>
    %47 = vector.broadcast %44 : vector<1x128xf32> to vector<8x128xf32>
    %48 = arith.subf %36, %47 : vector<8x128xf32>
    %49 = arith.mulf %46, %48 : vector<8x128xf32>
    %cst_29 = arith.constant dense<0.000000e+00> : vector<128xf32>
    %50 = vector.multi_reduction <add>, %49, %cst_29 [0] : vector<8x128xf32> to vector<128xf32>
    %51 = vector.shape_cast %50 : vector<128xf32> to vector<1x128xf32>
    %cst_30 = arith.constant 8.000000e+00 : f32
    %52 = vector.broadcast %cst_30 : f32 to vector<1x128xf32>
    %53 = arith.divf %51, %52 : vector<1x128xf32>
    %cst_31 = arith.constant 9.99999974E-6 : f32
    %54 = vector.broadcast %cst_31 : f32 to vector<1x128xf32>
    %55 = arith.addf %53, %54 : vector<1x128xf32>
    %56 = math.rsqrt %55 : vector<1x128xf32>
    %57 = arith.mulf %38, %56 : vector<1x128xf32>
    %58 = arith.mulf %44, %57 : vector<1x128xf32>
    %59 = arith.subf %40, %58 : vector<1x128xf32>
    %60 = vector.broadcast %57 : vector<1x128xf32> to vector<8x128xf32>
    %61 = arith.mulf %36, %60 : vector<8x128xf32>
    %62 = vector.broadcast %59 : vector<1x128xf32> to vector<8x128xf32>
    %63 = arith.addf %61, %62 : vector<8x128xf32>
    %64 = arith.mulf %63, %63 : vector<8x128xf32>
    %cst_32 = arith.constant dense<0.000000e+00> : vector<8xf32>
    %65 = vector.multi_reduction <add>, %64, %cst_32 [1] : vector<8x128xf32> to vector<8xf32>
    %66 = vector.shape_cast %65 : vector<8xf32> to vector<8x1xf32>
    %cst_33 = arith.constant 9.99999996E-13 : f32
    %67 = vector.broadcast %cst_33 : f32 to vector<8x1xf32>
    %68 = arith.addf %66, %67 : vector<8x1xf32>
    %69 = math.rsqrt %68 : vector<8x1xf32>
    %70 = vector.broadcast %69 : vector<8x1xf32> to vector<8x128xf32>
    %71 = arith.mulf %63, %70 : vector<8x128xf32>
    %c0_34 = arith.constant 0 : index
    %c0_35 = arith.constant 0 : index
    %c0_36 = arith.constant 0 : index
    %72 = vector.load %arg8[%c0_34, %c0_35, %c0_36] : memref<1x8x128xf32, #tpu.memory_space<vmem>>, vector<1x8x128xf32>
    %73 = vector.shape_cast %72 : vector<1x8x128xf32> to vector<8x128xf32>
    %74 = vector.shape_cast %71 : vector<8x128xf32> to vector<1x8x128xf32>
    tpu.vector_store %arg8[%c0_34, %c0_35, %c0_36], %74 {strides = array<i32>} : memref<1x8x128xf32, #tpu.memory_space<vmem>>, vector<1x8x128xf32>,
    return
  }
  func.func @transform_0(%arg0: i32) -> (i32, i32, i32) {
    %c0_i32 = arith.constant 0 : i32
    %c0_i32_0 = arith.constant 0 : i32
    %c0_i32_1 = arith.constant 0 : i32
    return %arg0, %c0_i32, %c0_i32_0 : i32, i32, i32
  }
  func.func @transform_1(%arg0: i32) -> (i32, i32, i32) {
    %c0_i32 = arith.constant 0 : i32
    %c0_i32_0 = arith.constant 0 : i32
    %c0_i32_1 = arith.constant 0 : i32
    return %arg0, %c0_i32, %c0_i32_0 : i32, i32, i32
  }
  func.func @transform_2(%arg0: i32) -> (i32, i32, i32) {
    %c0_i32 = arith.constant 0 : i32
    %c0_i32_0 = arith.constant 0 : i32
    %c0_i32_1 = arith.constant 0 : i32
    return %arg0, %c0_i32, %c0_i32_0 : i32, i32, i32
  }
  func.func @transform_3(%arg0: i32) -> (i32, i32, i32) {
    %c0_i32 = arith.constant 0 : i32
    %c0_i32_0 = arith.constant 0 : i32
    %c0_i32_1 = arith.constant 0 : i32
    return %arg0, %c0_i32, %c0_i32_0 : i32, i32, i32
  }
  func.func @transform_4(%arg0: i32) -> (i32, i32, i32) {
    %c0_i32 = arith.constant 0 : i32
    %c0_i32_0 = arith.constant 0 : i32
    %c0_i32_1 = arith.constant 0 : i32
    return %arg0, %c0_i32, %c0_i32_0 : i32, i32, i32
  }
  func.func @transform_5(%arg0: i32) -> (i32, i32, i32) {
    %c0_i32 = arith.constant 0 : i32
    %c0_i32_0 = arith.constant 0 : i32
    %c0_i32_1 = arith.constant 0 : i32
    return %arg0, %c0_i32, %c0_i32_0 : i32, i32, i32
  }
  func.func @transform_6(%arg0: i32) -> (i32, i32, i32) {
    %c0_i32 = arith.constant 0 : i32
    %c0_i32_0 = arith.constant 0 : i32
    %c0_i32_1 = arith.constant 0 : i32
    return %arg0, %c0_i32, %c0_i32_0 : i32, i32, i32
  }
  func.func @transform_7(%arg0: i32) -> (i32, i32, i32) {
    %c0_i32 = arith.constant 0 : i32
    %c0_i32_0 = arith.constant 0 : i32
    %c0_i32_1 = arith.constant 0 : i32
    return %arg0, %c0_i32, %c0_i32_0 : i32, i32, i32
  }
}

</mosaic_0001>

<llo_original>
// kernel: discriminator_forward.3
$region0: #{discriminator_forward.3}
  #allocation0 [shape = 'u32[]', space=smem, size = 0x4, offset = 0x4, fixed_abs, tag = 'smem constant byte address 0x4 - core index']
  #allocation1 [shape = 'u32[144,128]{1,0:T(1,128)}', space=vmem, size = 0x12000, scoped, tag = 'internal scratch']
  %s0 = inlined_call_operand.hbm [shape: f32[2,8,128], index: 0, kind: input, shape index: {}, may-alias: {0,1}]
  %s1 = inlined_call_operand.hbm [shape: f32[2,8,128], index: 1, kind: input, shape index: {}, may-alias: {0,1}]
  %s2 = inlined_call_operand.hbm [shape: f32[8,8], index: 2, kind: output, shape index: {}]
  %s3 = sld [smem:[#allocation0]]
  $region26: #{discriminator_forward.3} parent=0
    _
  %s5 = ssub.s32 1, %s3
  %s6 = scalar_select 0, %s5, %s3
  $region1: #{discriminator_forward.3} parent=0
    #allocation2 [shape = 'u8[4096]{0}', space=vmem, size = 0x1000, scoped, tag = 'input window, operand 0, single buffered']
    #allocation3 [shape = 's32[1]{0}', space=sflag, size = 0x4, scoped, tag = 'scoped memory for discriminator_forward.3']
    #allocation4 [shape = 's32[1]{0}', space=sflag, size = 0x4, scoped, tag = 'scoped memory for discriminator_forward.3']
    #allocation5 [shape = 'u8[4096]{0}', space=vmem, size = 0x1000, scoped, tag = 'input window, operand 1, single buffered']
    #allocation6 [shape = 's32[1]{0}', space=sflag, size = 0x4, scoped, tag = 'scoped memory for discriminator_forward.3']
    #allocation7 [shape = 'u8[4096]{0}', space=vmem, size = 0x1000, scoped, tag = 'output window, operand 0, single buffered']
    %7 = vsyncpa [#allocation3], 0
    %8 = vsyncpa [#allocation6], 0
    %9 = vsyncpa [#allocation4], 0
    // Predicated region
    $region2: #{discriminator_forward.3} parent=1 // pred_check
      _
    $region3: #{discriminator_forward.3} parent=1 // pred_check_branch
      %11 = sbr.rel (0) target = $region5
    $region4: #{discriminator_forward.3} parent=1 // pred_region
      %s13 = ssub.s32 128, 128
      %14 = vsyncadd [#allocation3], %s13
      %s16 = sshll.u32 [#allocation2], 4
      %s17 = int_to_ptr.vmem [resolvable:$true] %s16
      %19 = dma.hbm_to_vmem [thread:$0]  %s0, 128, %s17, [#allocation3]
    $region5: #{discriminator_forward.3} parent=1 // pred_fallthru
      _
    // Predicated region
    $region6: #{discriminator_forward.3} parent=1 // pred_check
      _
    $region7: #{discriminator_forward.3} parent=1 // pred_check_branch
      %21 = sbr.rel (0) target = $region9
    $region8: #{discriminator_forward.3} parent=1 // pred_region
      %s23 = ssub.s32 128, 128
      %24 = vsyncadd [#allocation6], %s23
      %s25 = scalar_lea.hbm %s1, 128
      %s27 = sshll.u32 [#allocation5], 4
      %s28 = int_to_ptr.vmem [resolvable:$true] %s27
      %30 = dma.hbm_to_vmem [thread:$0]  %s25, 128, %s28, [#allocation6]
    $region9: #{discriminator_forward.3} parent=1 // pred_fallthru
      _
    // Predicated region
    $region10: #{discriminator_forward.3} parent=1 // pred_check
      _
    $region11: #{discriminator_forward.3} parent=1 // pred_check_branch
      %32 = sbr.rel (0) target = $region13
    $region12: #{discriminator_forward.3} parent=1 // pred_region
      %33 = dma.done [#allocation3], 128
    $region13: #{discriminator_forward.3} parent=1 // pred_fallthru
      _
    // Predicated region
    $region14: #{discriminator_forward.3} parent=1 // pred_check
      _
    $region15: #{discriminator_forward.3} parent=1 // pred_check_branch
      %35 = sbr.rel (0) target = $region17
    $region16: #{discriminator_forward.3} parent=1 // pred_region
      %36 = dma.done [#allocation6], 128
    $region17: #{discriminator_forward.3} parent=1 // pred_fallthru
      _
    %v37 = vld [vmem:[#allocation2] sm:$0xff]
    %v38 = vld [vmem:[#allocation5] sm:$0xff]
    %39 = vmatprep.subr.mxu0 0.0
    %40 = vmatpush1.xpose.msra.mxu0 %v38
    %41 = vmatprep.subr.mxu0 0.0
    %42 = vmatpush1.xpose.msra.mxu0 0.0
    %43 = vmatprep.subr.mxu0 0.0
    %44 = vmatpush1.xpose.msra.mxu0 0.0
    %45 = vmatprep.subr.mxu0 0.0
    %46 = vmatpush1.xpose.msra.mxu0 0.0
    %47 = vmatprep.subr.mxu0 0.0
    %48 = vmatpush1.xpose.msra.mxu0 0.0
    %49 = vmatprep.subr.mxu0 0.0
    %50 = vmatpush1.xpose.msra.mxu0 0.0
    %51 = vmatprep.subr.mxu0 0.0
    %52 = vmatpush1.xpose.msra.mxu0 0.0
    %53 = vmatprep.subr.mxu0 0.0
    %54 = vmatpush1.xpose.msra.mxu0 0.0
    %55 = vmatprep.subr.mxu0 0.0
    %56 = vmatpush1.xpose.msra.mxu0 0.0
    %57 = vmatprep.subr.mxu0 0.0
    %58 = vmatpush1.xpose.msra.mxu0 0.0
    %59 = vmatprep.subr.mxu0 0.0
    %60 = vmatpush1.xpose.msra.mxu0 0.0
    %61 = vmatprep.subr.mxu0 0.0
    %62 = vmatpush1.xpose.msra.mxu0 0.0
    %63 = vmatprep.subr.mxu0 0.0
    %64 = vmatpush1.xpose.msra.mxu0 0.0
    %65 = vmatprep.subr.mxu0 0.0
    %66 = vmatpush1.xpose.msra.mxu0 0.0
    %67 = vmatprep.subr.mxu0 0.0
    %68 = vmatpush1.xpose.msra.mxu0 0.0
    %69 = vmatprep.subr.mxu0 0.0
    %70 = vmatpush1.xpose.msra.mxu0 0.0
    %71 = vmatprep.subr.mxu0 0.0
    %72 = vmatpush1.xpose.msra.mxu0 0.0
    %73 = vmatprep.subr.mxu0 0.0
    %74 = vmatpush1.xpose.msra.mxu0 0.0
    %75 = vmatprep.subr.mxu0 0.0
    %76 = vmatpush1.xpose.msra.mxu0 0.0
    %77 = vmatprep.subr.mxu0 0.0
    %78 = vmatpush1.xpose.msra.mxu0 0.0
    %79 = vmatprep.subr.mxu0 0.0
    %80 = vmatpush1.xpose.msra.mxu0 0.0
    %81 = vmatprep.subr.mxu0 0.0
    %82 = vmatpush1.xpose.msra.mxu0 0.0
    %83 = vmatprep.subr.mxu0 0.0
    %84 = vmatpush1.xpose.msra.mxu0 0.0
    %85 = vmatprep.subr.mxu0 0.0
    %86 = vmatpush1.xpose.msra.mxu0 0.0
    %87 = vmatprep.subr.mxu0 0.0
    %88 = vmatpush1.xpose.msra.mxu0 0.0
    %89 = vmatprep.subr.mxu0 0.0
    %90 = vmatpush1.xpose.msra.mxu0 0.0
    %91 = vmatprep.subr.mxu0 0.0
    %92 = vmatpush1.xpose.msra.mxu0 0.0
    %93 = vmatprep.subr.mxu0 0.0
    %94 = vmatpush1.xpose.msra.mxu0 0.0
    %95 = vmatprep.subr.mxu0 0.0
    %96 = vmatpush1.xpose.msra.mxu0 0.0
    %97 = vmatprep.subr.mxu0 0.0
    %98 = vmatpush1.xpose.msra.mxu0 0.0
    %99 = vmatprep.subr.mxu0 0.0
    %100 = vmatpush1.xpose.msra.mxu0 0.0
    %101 = vmatprep.subr.mxu0 0.0
    %102 = vmatpush1.xpose.msra.mxu0 0.0
    %103 = vmatprep.mubr.f32.mxu0 0.0
    %104 = vmatmul.mubr.f32.gmra.mrb[0].mxu0 %v37
    %v105 = vpop.f32.mrb[0].mxu0
    %v106 = vadd.f32 0.0, %v105
    %v107 = vpop.f32.mrb[0].mxu0
    %108 = vdwg.mxu0
    %vm109 = vcmask 64512
    %110 = vst.msk [vmem:[#allocation7] sm:$0xff] %vm109, %v106
    // Predicated region
    $region18: #{discriminator_forward.3} parent=1 // pred_check
      _
    $region19: #{discriminator_forward.3} parent=1 // pred_check_branch
      %112 = sbr.rel (0) target = $region21
    $region20: #{discriminator_forward.3} parent=1 // pred_region
      %s114 = ssub.s32 128, 128
      %115 = vsyncadd [#allocation4], %s114
      %s117 = sshll.u32 [#allocation7], 4
      %s118 = int_to_ptr.vmem [resolvable:$true] %s117
      %120 = dma.vmem_to_hbm [thread:$0]  %s118, 128, %s2, [#allocation4]
    $region21: #{discriminator_forward.3} parent=1 // pred_fallthru
      _
    // Predicated region
    $region22: #{discriminator_forward.3} parent=1 // pred_check
      _
    $region23: #{discriminator_forward.3} parent=1 // pred_check_branch
      %122 = sbr.rel (0) target = $region25
    $region24: #{discriminator_forward.3} parent=1 // pred_region
      %123 = dma.done [#allocation4], 128
    $region25: #{discriminator_forward.3} parent=1 // pred_fallthru
      _
    %124 = vsyncpa [#allocation3], 1
    %125 = vsyncpa [#allocation6], 1
    %126 = vsyncpa [#allocation4], 1

// kernel: discriminator_forward.2
$region0: #{discriminator_forward.2}
  #allocation0 [shape = 'u32[]', space=smem, size = 0x4, offset = 0x4, fixed_abs, tag = 'smem constant byte address 0x4 - core index']
  #allocation1 [shape = 'u32[144,128]{1,0:T(1,128)}', space=vmem, size = 0x12000, scoped, tag = 'internal scratch']
  %s0 = inlined_call_operand.hbm [shape: f32[2,8,32], index: 0, kind: input, shape index: {}]
  %s1 = inlined_call_operand.hbm [shape: f32[2,32,256], index: 1, kind: input, shape index: {}]
  %s2 = inlined_call_operand.hbm [shape: f32[2,1,256], index: 2, kind: input, shape index: {}]
  %s3 = inlined_call_operand.hbm [shape: f32[2,1,256], index: 3, kind: input, shape index: {}]
  %s4 = inlined_call_operand.hbm [shape: f32[2,256,128], index: 4, kind: input, shape index: {}]
  %s5 = inlined_call_operand.hbm [shape: f32[2,1,128], index: 5, kind: input, shape index: {}]
  %s6 = inlined_call_operand.hbm [shape: f32[2,1,128], index: 6, kind: input, shape index: {}]
  %s7 = inlined_call_operand.hbm [shape: f32[2,8,128], index: 7, kind: output, shape index: {}]
  %s8 = sld [smem:[#allocation0]]
  $region89: #{discriminator_forward.2} parent=0
    _
  %s10 = ssub.s32 1, %s8
  %s11 = scalar_select 0, %s10, %s8
  $region1: #{discriminator_forward.2} parent=0
    #allocation2 [shape = 'u8[8192]{0}', space=vmem, size = 0x2000, scoped, tag = 'input window, operand 0']
    #allocation3 [shape = 's32[2]{0}', space=sflag, size = 0x8, scoped, tag = 'scoped memory for discriminator_forward.2']
    #allocation4 [shape = 's32[2]{0}', space=sflag, size = 0x8, scoped, tag = 'scoped memory for discriminator_forward.2']
    #allocation5 [shape = 'u8[65536]{0}', space=vmem, size = 0x10000, scoped, tag = 'input window, operand 1']
    #allocation6 [shape = 's32[2]{0}', space=sflag, size = 0x8, scoped, tag = 'scoped memory for discriminator_forward.2']
    #allocation7 [shape = 'u8[2048]{0}', space=vmem, size = 0x800, scoped, tag = 'input window, operand 2']
    #allocation8 [shape = 'u8[2048]{0}', space=vmem, size = 0x800, scoped, tag = 'input window, operand 3']
    #allocation9 [shape = 's32[2]{0}', space=sflag, size = 0x8, scoped, tag = 'scoped memory for discriminator_forward.2']
    #allocation10 [shape = 'u8[262144]{0}', space=vmem, size = 0x40000, scoped, tag = 'input window, operand 4']
    #allocation11 [shape = 'u8[1024]{0}', space=vmem, size = 0x400, scoped, tag = 'input window, operand 5']
    #allocation12 [shape = 's32[2]{0}', space=sflag, size = 0x8, scoped, tag = 'scoped memory for discriminator_forward.2']
    #allocation13 [shape = 'u8[1024]{0}', space=vmem, size = 0x400, scoped, tag = 'input window, operand 6']
    #allocation14 [shape = 'u8[8192]{0}', space=vmem, size = 0x2000, scoped, tag = 'output window, operand 0']
    %12 = vsyncpa [#allocation3], 0
    %s13 = scalar_lea.sflag [#allocation3], 1
    %14 = vsyncpa %s13, 0
    %15 = vsyncpa [#allocation6], 0
    %s16 = scalar_lea.sflag [#allocation6], 1
    %17 = vsyncpa %s16, 0
    %18 = vsyncpa [#allocation9], 0
    %s19 = scalar_lea.sflag [#allocation9], 1
    %20 = vsyncpa %s19, 0
    %21 = vsyncpa [#allocation12], 0
    %s22 = scalar_lea.sflag [#allocation12], 1
    %23 = vsyncpa %s22, 0
    %24 = vsyncpa [#allocation4], 0
    %s25 = scalar_lea.sflag [#allocation4], 1
    %26 = vsyncpa %s25, 0
    loop: start=0, step=1, limit=4
    $region2: #{discriminator_forward.2} parent=1 // loop_pre_header
      _
    $region3: #{discriminator_forward.2} parent=1 // loop_header
      %s28 = sphi 0, %s32
      %p29 = scmp.ge.s32.totalorder %s28, 4
      %s38 = sphi 0, %s40
      %s41 = sphi 0, %s38
      %s42 = sphi 0, %s41
      %s58 = sphi 0, %s42
      %s64 = sphi 0, %s66
      %s67 = sphi 0, %s64
      %s68 = sphi 0, %s67
      %s84 = sphi 0, %s68
      %s90 = sphi 0, %s92
      %s93 = sphi 0, %s90
      %s94 = sphi 0, %s93
      %s110 = sphi 0, %s94
      %s116 = sphi 0, %s118
      %s119 = sphi 0, %s116
      %s120 = sphi 0, %s119
      %s136 = sphi 0, %s120
      %s142 = sphi 0, %s144
      %s145 = sphi 0, %s142
      %s146 = sphi 0, %s145
      %s162 = sphi 0, %s146
      %s168 = sphi 0, %s170
      %s171 = sphi 0, %s168
      %s172 = sphi 0, %s171
      %s188 = sphi 0, %s172
      %s194 = sphi 0, %s196
      %s197 = sphi 0, %s194
      %s198 = sphi 0, %s197
      %s214 = sphi 0, %s198
      %s220 = sphi 0, %s222
      %s223 = sphi 0, %s220
      %s224 = sphi 0, %s223
      %s240 = sphi 0, %s224
    $region4: #{discriminator_forward.2} parent=1 // loop_header_branch
      %31 = sbr.rel (%p29) target = $region8
    $region5: #{discriminator_forward.2} parent=1 // loop_body
      %s33 = ssub.s32 %s28, 1
      %s34 = ssub.s32 %s28, 2
      %s35 = sadd.s32 %s28, 1
      %s36 = ssub.s32 %s28, %s35
      %p37 = scmp.eq.s32.totalorder %s36, 0
      %s39 = sadd.s32 %s38, 1
      %s40 = scalar_select %p37, %s38, %s39
      %p43 = pneg %p37
      %p44 = scmp.eq.s32.totalorder %s28, 1
      %p45 = por %p43, %p44
      %p46 = scmp.ne.s32.totalorder %s38, %s41
      %p47 = scmp.eq.s32.totalorder %s28, 0
      %p48 = por %p46, %p47
      %p49 = scmp.ne.s32.totalorder %s38, %s41
      %p50 = scmp.eq.s32.totalorder %s33, 1
      %p51 = por %p49, %p50
      %p52 = scmp.ne.s32.totalorder %s41, %s42
      %p53 = scmp.eq.s32.totalorder %s33, 0
      %p54 = por %p52, %p53
      %p55 = scmp.ne.s32.totalorder %s41, %s42
      %p56 = scmp.eq.s32.totalorder %s34, 1
      %p57 = por %p55, %p56
      %p59 = scmp.ne.s32.totalorder %s42, %s58
      %p60 = scmp.eq.s32.totalorder %s34, 0
      %p61 = por %p59, %p60
      %s62 = ssub.s32 %s28, %s35
      %p63 = scmp.eq.s32.totalorder %s62, 0
      %s65 = sadd.s32 %s64, 1
      %s66 = scalar_select %p63, %s64, %s65
      %p69 = pneg %p63
      %p70 = scmp.eq.s32.totalorder %s28, 1
      %p71 = por %p69, %p70
      %p72 = scmp.ne.s32.totalorder %s64, %s67
      %p73 = scmp.eq.s32.totalorder %s28, 0
      %p74 = por %p72, %p73
      %p75 = scmp.ne.s32.totalorder %s64, %s67
      %p76 = scmp.eq.s32.totalorder %s33, 1
      %p77 = por %p75, %p76
      %p78 = scmp.ne.s32.totalorder %s67, %s68
      %p79 = scmp.eq.s32.totalorder %s33, 0
      %p80 = por %p78, %p79
      %p81 = scmp.ne.s32.totalorder %s67, %s68
      %p82 = scmp.eq.s32.totalorder %s34, 1
      %p83 = por %p81, %p82
      %p85 = scmp.ne.s32.totalorder %s68, %s84
      %p86 = scmp.eq.s32.totalorder %s34, 0
      %p87 = por %p85, %p86
      %s88 = ssub.s32 %s28, %s35
      %p89 = scmp.eq.s32.totalorder %s88, 0
      %s91 = sadd.s32 %s90, 1
      %s92 = scalar_select %p89, %s90, %s91
      %p95 = pneg %p89
      %p96 = scmp.eq.s32.totalorder %s28, 1
      %p97 = por %p95, %p96
      %p98 = scmp.ne.s32.totalorder %s90, %s93
      %p99 = scmp.eq.s32.totalorder %s28, 0
      %p100 = por %p98, %p99
      %p101 = scmp.ne.s32.totalorder %s90, %s93
      %p102 = scmp.eq.s32.totalorder %s33, 1
      %p103 = por %p101, %p102
      %p104 = scmp.ne.s32.totalorder %s93, %s94
      %p105 = scmp.eq.s32.totalorder %s33, 0
      %p106 = por %p104, %p105
      %p107 = scmp.ne.s32.totalorder %s93, %s94
      %p108 = scmp.eq.s32.totalorder %s34, 1
      %p109 = por %p107, %p108
      %p111 = scmp.ne.s32.totalorder %s94, %s110
      %p112 = scmp.eq.s32.totalorder %s34, 0
      %p113 = por %p111, %p112
      %s114 = ssub.s32 %s28, %s35
      %p115 = scmp.eq.s32.totalorder %s114, 0
      %s117 = sadd.s32 %s116, 1
      %s118 = scalar_select %p115, %s116, %s117
      %p121 = pneg %p115
      %p122 = scmp.eq.s32.totalorder %s28, 1
      %p123 = por %p121, %p122
      %p124 = scmp.ne.s32.totalorder %s116, %s119
      %p125 = scmp.eq.s32.totalorder %s28, 0
      %p126 = por %p124, %p125
      %p127 = scmp.ne.s32.totalorder %s116, %s119
      %p128 = scmp.eq.s32.totalorder %s33, 1
      %p129 = por %p127, %p128
      %p130 = scmp.ne.s32.totalorder %s119, %s120
      %p131 = scmp.eq.s32.totalorder %s33, 0
      %p132 = por %p130, %p131
      %p133 = scmp.ne.s32.totalorder %s119, %s120
      %p134 = scmp.eq.s32.totalorder %s34, 1
      %p135 = por %p133, %p134
      %p137 = scmp.ne.s32.totalorder %s120, %s136
      %p138 = scmp.eq.s32.totalorder %s34, 0
      %p139 = por %p137, %p138
      %s140 = ssub.s32 %s28, %s35
      %p141 = scmp.eq.s32.totalorder %s140, 0
      %s143 = sadd.s32 %s142, 1
      %s144 = scalar_select %p141, %s142, %s143
      %p147 = pneg %p141
      %p148 = scmp.eq.s32.totalorder %s28, 1
      %p149 = por %p147, %p148
      %p150 = scmp.ne.s32.totalorder %s142, %s145
      %p151 = scmp.eq.s32.totalorder %s28, 0
      %p152 = por %p150, %p151
      %p153 = scmp.ne.s32.totalorder %s142, %s145
      %p154 = scmp.eq.s32.totalorder %s33, 1
      %p155 = por %p153, %p154
      %p156 = scmp.ne.s32.totalorder %s145, %s146
      %p157 = scmp.eq.s32.totalorder %s33, 0
      %p158 = por %p156, %p157
      %p159 = scmp.ne.s32.totalorder %s145, %s146
      %p160 = scmp.eq.s32.totalorder %s34, 1
      %p161 = por %p159, %p160
      %p163 = scmp.ne.s32.totalorder %s146, %s162
      %p164 = scmp.eq.s32.totalorder %s34, 0
      %p165 = por %p163, %p164
      %s166 = ssub.s32 %s28, %s35
      %p167 = scmp.eq.s32.totalorder %s166, 0
      %s169 = sadd.s32 %s168, 1
      %s170 = scalar_select %p167, %s168, %s169
      %p173 = pneg %p167
      %p174 = scmp.eq.s32.totalorder %s28, 1
      %p175 = por %p173, %p174
      %p176 = scmp.ne.s32.totalorder %s168, %s171
      %p177 = scmp.eq.s32.totalorder %s28, 0
      %p178 = por %p176, %p177
      %p179 = scmp.ne.s32.totalorder %s168, %s171
      %p180 = scmp.eq.s32.totalorder %s33, 1
      %p181 = por %p179, %p180
      %p182 = scmp.ne.s32.totalorder %s171, %s172
      %p183 = scmp.eq.s32.totalorder %s33, 0
      %p184 = por %p182, %p183
      %p185 = scmp.ne.s32.totalorder %s171, %s172
      %p186 = scmp.eq.s32.totalorder %s34, 1
      %p187 = por %p185, %p186
      %p189 = scmp.ne.s32.totalorder %s172, %s188
      %p190 = scmp.eq.s32.totalorder %s34, 0
      %p191 = por %p189, %p190
      %s192 = ssub.s32 %s28, %s35
      %p193 = scmp.eq.s32.totalorder %s192, 0
      %s195 = sadd.s32 %s194, 1
      %s196 = scalar_select %p193, %s194, %s195
      %p199 = pneg %p193
      %p200 = scmp.eq.s32.totalorder %s28, 1
      %p201 = por %p199, %p200
      %p202 = scmp.ne.s32.totalorder %s194, %s197
      %p203 = scmp.eq.s32.totalorder %s28, 0
      %p204 = por %p202, %p203
      %p205 = scmp.ne.s32.totalorder %s194, %s197
      %p206 = scmp.eq.s32.totalorder %s33, 1
      %p207 = por %p205, %p206
      %p208 = scmp.ne.s32.totalorder %s197, %s198
      %p209 = scmp.eq.s32.totalorder %s33, 0
      %p210 = por %p208, %p209
      %p211 = scmp.ne.s32.totalorder %s197, %s198
      %p212 = scmp.eq.s32.totalorder %s34, 1
      %p213 = por %p211, %p212
      %p215 = scmp.ne.s32.totalorder %s198, %s214
      %p216 = scmp.eq.s32.totalorder %s34, 0
      %p217 = por %p215, %p216
      %s218 = ssub.s32 %s28, %s35
      %p219 = scmp.eq.s32.totalorder %s218, 0
      %s221 = sadd.s32 %s220, 1
      %s222 = scalar_select %p219, %s220, %s221
      %p225 = pneg %p219
      %p226 = scmp.eq.s32.totalorder %s28, 1
      %p227 = por %p225, %p226
      %p228 = scmp.ne.s32.totalorder %s220, %s223
      %p229 = scmp.eq.s32.totalorder %s28, 0
      %p230 = por %p228, %p229
      %p231 = scmp.ne.s32.totalorder %s220, %s223
      %p232 = scmp.eq.s32.totalorder %s33, 1
      %p233 = por %p231, %p232
      %p234 = scmp.ne.s32.totalorder %s223, %s224
      %p235 = scmp.eq.s32.totalorder %s33, 0
      %p236 = por %p234, %p235
      %p237 = scmp.ne.s32.totalorder %s223, %s224
      %p238 = scmp.eq.s32.totalorder %s34, 1
      %p239 = por %p237, %p238
      %p241 = scmp.ne.s32.totalorder %s224, %s240
      %p242 = scmp.eq.s32.totalorder %s34, 0
      %p243 = por %p241, %p242
      %p244 = scmp.le.s32.totalorder 1, %s28
      %p245 = scmp.lt.s32.totalorder %s28, 3
      %p246 = pnand %p244, %p245
      %p247 = pneg %p246
      // Predicated region
      $region9: #{discriminator_forward.2} parent=5 // pred_check
        _
      $region10: #{discriminator_forward.2} parent=5 // pred_check_branch
        %249 = sbr.rel (%p246) target = $region12
      $region11: #{discriminator_forward.2} parent=5 // pred_region
        %s250 = ssub.s32 %s28, 1
      $region12: #{discriminator_forward.2} parent=5 // pred_fallthru
        _
      %p251 = scmp.lt.s32.totalorder %s28, 2
      // Predicated region
      $region13: #{discriminator_forward.2} parent=5 // pred_check
        %p252 = pneg %p251
      $region14: #{discriminator_forward.2} parent=5 // pred_check_branch
        %254 = sbr.rel (%p252) target = $region16
      $region15: #{discriminator_forward.2} parent=5 // pred_region
        // Predicated region
        $region17: #{discriminator_forward.2} parent=15 // pred_check
          %p255 = pneg %p48
        $region18: #{discriminator_forward.2} parent=15 // pred_check_branch
          %257 = sbr.rel (%p255) target = $region20
        $region19: #{discriminator_forward.2} parent=15 // pred_region
          %s258 = sand.u32 %s38, 1
          %s259 = scalar_lea.sflag [#allocation3], %s258
          %s260 = sand.u32 %s38, 1
          %s261 = smul.addr %s260, 8
          %s262 = scalar_lea.vmem [#allocation2], %s261
          %s264 = ssub.s32 128, 128
          %265 = vsyncadd %s259, %s264
          %s266 = smul.addr %s28, 128
          %s267 = scalar_lea.hbm %s0, %s266
          %s269 = sshll.u32 %s262, 4
          %s270 = int_to_ptr.vmem [resolvable:$true] %s269
          %272 = dma.hbm_to_vmem [thread:$0]  %s267, 128, %s270, %s259
        $region20: #{discriminator_forward.2} parent=15 // pred_fallthru
          _
        // Predicated region
        $region21: #{discriminator_forward.2} parent=15 // pred_check
          %p273 = pneg %p74
        $region22: #{discriminator_forward.2} parent=15 // pred_check_branch
          %275 = sbr.rel (%p273) target = $region24
        $region23: #{discriminator_forward.2} parent=15 // pred_region
          %s276 = sand.u32 %s28, 1
          %s277 = scalar_lea.sflag [#allocation6], %s276
          %s278 = sand.u32 %s64, 1
          %s279 = smul.addr %s278, 64
          %s280 = scalar_lea.vmem [#allocation5], %s279
          %s282 = ssub.s32 1024, 1024
          %283 = vsyncadd %s277, %s282
          %s284 = smul.addr %s28, 8
          %s285 = smul.addr %s284, 128
          %s286 = scalar_lea.hbm %s1, %s285
          %s287 = sshll.u32 %s280, 4
          %s288 = int_to_ptr.vmem [resolvable:$true] %s287
          %293 = dma.hbm_to_vmem [thread:$0]  %s286, 1024, %s288, %s277, 256, 256, 16
        $region24: #{discriminator_forward.2} parent=15 // pred_fallthru
          _
        // Predicated region
        $region25: #{discriminator_forward.2} parent=15 // pred_check
          %p294 = pneg %p100
        $region26: #{discriminator_forward.2} parent=15 // pred_check_branch
          %296 = sbr.rel (%p294) target = $region28
        $region27: #{discriminator_forward.2} parent=15 // pred_region
          %s297 = sand.u32 %s28, 1
          %s298 = scalar_lea.sflag [#allocation6], %s297
          %s299 = sand.u32 %s90, 1
          %s300 = smul.addr %s299, 2
          %s301 = scalar_lea.vmem [#allocation7], %s300
          %s303 = ssub.s32 32, 32
          %304 = vsyncadd %s298, %s303
          %s305 = smul.addr %s28, 2
          %s306 = smul.addr %s305, 16
          %s307 = scalar_lea.hbm %s2, %s306
          %s309 = sshll.u32 %s301, 4
          %s310 = int_to_ptr.vmem [resolvable:$true] %s309
          %312 = dma.hbm_to_vmem [thread:$0]  %s307, 32, %s310, %s298
        $region28: #{discriminator_forward.2} parent=15 // pred_fallthru
          _
        // Predicated region
        $region29: #{discriminator_forward.2} parent=15 // pred_check
          %p313 = pneg %p126
        $region30: #{discriminator_forward.2} parent=15 // pred_check_branch
          %315 = sbr.rel (%p313) target = $region32
        $region31: #{discriminator_forward.2} parent=15 // pred_region
          %s316 = sand.u32 %s28, 1
          %s317 = scalar_lea.sflag [#allocation9], %s316
          %s318 = sand.u32 %s116, 1
          %s319 = smul.addr %s318, 2
          %s320 = scalar_lea.vmem [#allocation8], %s319
          %s322 = ssub.s32 32, 32
          %323 = vsyncadd %s317, %s322
          %s324 = smul.addr %s28, 2
          %s325 = smul.addr %s324, 16
          %s326 = scalar_lea.hbm %s3, %s325
          %s328 = sshll.u32 %s320, 4
          %s329 = int_to_ptr.vmem [resolvable:$true] %s328
          %331 = dma.hbm_to_vmem [thread:$0]  %s326, 32, %s329, %s317
        $region32: #{discriminator_forward.2} parent=15 // pred_fallthru
          _
        // Predicated region
        $region33: #{discriminator_forward.2} parent=15 // pred_check
          %p332 = pneg %p152
        $region34: #{discriminator_forward.2} parent=15 // pred_check_branch
          %334 = sbr.rel (%p332) target = $region36
        $region35: #{discriminator_forward.2} parent=15 // pred_region
          %s335 = sand.u32 %s28, 1
          %s336 = scalar_lea.sflag [#allocation9], %s335
          %s337 = sand.u32 %s142, 1
          %s338 = smul.addr %s337, 256
          %s339 = scalar_lea.vmem [#allocation10], %s338
          %s341 = ssub.s32 4096, 4096
          %342 = vsyncadd %s336, %s341
          %s343 = smul.addr %s28, 32
          %s344 = smul.addr %s343, 128
          %s345 = scalar_lea.hbm %s4, %s344
          %s346 = sshll.u32 %s339, 4
          %s347 = int_to_ptr.vmem [resolvable:$true] %s346
          %352 = dma.hbm_to_vmem [thread:$0]  %s345, 4096, %s347, %s336, 128, 128, 8
        $region36: #{discriminator_forward.2} parent=15 // pred_fallthru
          _
        // Predicated region
        $region37: #{discriminator_forward.2} parent=15 // pred_check
          %p353 = pneg %p178
        $region38: #{discriminator_forward.2} parent=15 // pred_check_branch
          %355 = sbr.rel (%p353) target = $region40
        $region39: #{discriminator_forward.2} parent=15 // pred_region
          %s356 = sand.u32 %s28, 1
          %s357 = scalar_lea.sflag [#allocation12], %s356
          %s358 = sand.u32 %s168, 1
          %s359 = scalar_lea.vmem [#allocation11], %s358
          %s361 = ssub.s32 16, 16
          %362 = vsyncadd %s357, %s361
          %s363 = smul.addr %s28, 16
          %s364 = scalar_lea.hbm %s5, %s363
          %s366 = sshll.u32 %s359, 4
          %s367 = int_to_ptr.vmem [resolvable:$true] %s366
          %369 = dma.hbm_to_vmem [thread:$0]  %s364, 16, %s367, %s357
        $region40: #{discriminator_forward.2} parent=15 // pred_fallthru
          _
        // Predicated region
        $region41: #{discriminator_forward.2} parent=15 // pred_check
          %p370 = pneg %p204
        $region42: #{discriminator_forward.2} parent=15 // pred_check_branch
          %372 = sbr.rel (%p370) target = $region44
        $region43: #{discriminator_forward.2} parent=15 // pred_region
          %s373 = sand.u32 %s28, 1
          %s374 = scalar_lea.sflag [#allocation12], %s373
          %s375 = sand.u32 %s194, 1
          %s376 = scalar_lea.vmem [#allocation13], %s375
          %s378 = ssub.s32 16, 16
          %379 = vsyncadd %s374, %s378
          %s380 = smul.addr %s28, 16
          %s381 = scalar_lea.hbm %s6, %s380
          %s383 = sshll.u32 %s376, 4
          %s384 = int_to_ptr.vmem [resolvable:$true] %s383
          %386 = dma.hbm_to_vmem [thread:$0]  %s381, 16, %s384, %s374
        $region44: #{discriminator_forward.2} parent=15 // pred_fallthru
          _
      $region16: #{discriminator_forward.2} parent=5 // pred_fallthru
        _
      %p387 = scmp.le.s32.totalorder 1, %s28
      %p388 = scmp.lt.s32.totalorder %s28, 3
      %p389 = pnand %p387, %p388
      %p390 = pneg %p389
      // Predicated region
      $region45: #{discriminator_forward.2} parent=5 // pred_check
        _
      $region46: #{discriminator_forward.2} parent=5 // pred_check_branch
        %392 = sbr.rel (%p389) target = $region48
      $region47: #{discriminator_forward.2} parent=5 // pred_region
        %s393 = ssub.s32 %s28, 1
        %s394 = sand.u32 %s41, 1
        %s395 = scalar_lea.sflag [#allocation3], %s394
        %s396 = sand.u32 %s41, 1
        %s397 = smul.addr %s396, 8
        %s398 = scalar_lea.vmem [#allocation2], %s397
        // Predicated region
        $region49: #{discriminator_forward.2} parent=47 // pred_check
          %p399 = pneg %p54
        $region50: #{discriminator_forward.2} parent=47 // pred_check_branch
          %401 = sbr.rel (%p399) target = $region52
        $region51: #{discriminator_forward.2} parent=47 // pred_region
          %402 = dma.done %s395, 128
        $region52: #{discriminator_forward.2} parent=47 // pred_fallthru
          _
        %s403 = sand.u32 %s33, 1
        %s404 = scalar_lea.sflag [#allocation6], %s403
        %s405 = sand.u32 %s67, 1
        %s406 = smul.addr %s405, 64
        %s407 = scalar_lea.vmem [#allocation5], %s406
        // Predicated region
        $region53: #{discriminator_forward.2} parent=47 // pred_check
          %p408 = pneg %p80
        $region54: #{discriminator_forward.2} parent=47 // pred_check_branch
          %410 = sbr.rel (%p408) target = $region56
        $region55: #{discriminator_forward.2} parent=47 // pred_region
          %411 = dma.done %s404, 1024
        $region56: #{discriminator_forward.2} parent=47 // pred_fallthru
          _
        %s412 = sand.u32 %s33, 1
        %s413 = scalar_lea.sflag [#allocation6], %s412
        %s414 = sand.u32 %s93, 1
        %s415 = smul.addr %s414, 2
        %s416 = scalar_lea.vmem [#allocation7], %s415
        // Predicated region
        $region57: #{discriminator_forward.2} parent=47 // pred_check
          %p417 = pneg %p106
        $region58: #{discriminator_forward.2} parent=47 // pred_check_branch
          %419 = sbr.rel (%p417) target = $region60
        $region59: #{discriminator_forward.2} parent=47 // pred_region
          %420 = dma.done %s413, 32
        $region60: #{discriminator_forward.2} parent=47 // pred_fallthru
          _
        %s421 = sand.u32 %s33, 1
        %s422 = scalar_lea.sflag [#allocation9], %s421
        %s423 = sand.u32 %s119, 1
        %s424 = smul.addr %s423, 2
        %s425 = scalar_lea.vmem [#allocation8], %s424
        // Predicated region
        $region61: #{discriminator_forward.2} parent=47 // pred_check
          %p426 = pneg %p132
        $region62: #{discriminator_forward.2} parent=47 // pred_check_branch
          %428 = sbr.rel (%p426) target = $region64
        $region63: #{discriminator_forward.2} parent=47 // pred_region
          %429 = dma.done %s422, 32
        $region64: #{discriminator_forward.2} parent=47 // pred_fallthru
          _
        %s430 = sand.u32 %s33, 1
        %s431 = scalar_lea.sflag [#allocation9], %s430
        %s432 = sand.u32 %s145, 1
        %s433 = smul.addr %s432, 256
        %s434 = scalar_lea.vmem [#allocation10], %s433
        // Predicated region
        $region65: #{discriminator_forward.2} parent=47 // pred_check
          %p435 = pneg %p158
        $region66: #{discriminator_forward.2} parent=47 // pred_check_branch
          %437 = sbr.rel (%p435) target = $region68
        $region67: #{discriminator_forward.2} parent=47 // pred_region
          %438 = dma.done %s431, 4096
        $region68: #{discriminator_forward.2} parent=47 // pred_fallthru
          _
        %s439 = sand.u32 %s33, 1
        %s440 = scalar_lea.sflag [#allocation12], %s439
        %s441 = sand.u32 %s171, 1
        %s442 = scalar_lea.vmem [#allocation11], %s441
        // Predicated region
        $region69: #{discriminator_forward.2} parent=47 // pred_check
          %p443 = pneg %p184
        $region70: #{discriminator_forward.2} parent=47 // pred_check_branch
          %445 = sbr.rel (%p443) target = $region72
        $region71: #{discriminator_forward.2} parent=47 // pred_region
          %446 = dma.done %s440, 16
        $region72: #{discriminator_forward.2} parent=47 // pred_fallthru
          _
        %s447 = sand.u32 %s33, 1
        %s448 = scalar_lea.sflag [#allocation12], %s447
        %s449 = sand.u32 %s197, 1
        %s450 = scalar_lea.vmem [#allocation13], %s449
        // Predicated region
        $region73: #{discriminator_forward.2} parent=47 // pred_check
          %p451 = pneg %p210
        $region74: #{discriminator_forward.2} parent=47 // pred_check_branch
          %453 = sbr.rel (%p451) target = $region76
        $region75: #{discriminator_forward.2} parent=47 // pred_region
          %454 = dma.done %s448, 16
        $region76: #{discriminator_forward.2} parent=47 // pred_fallthru
          _
        %s455 = sand.u32 %s41, 1
        %s456 = scalar_lea.sflag [#allocation3], %s455
        %s457 = sand.u32 %s41, 1
        %s458 = smul.addr %s457, 8
        %s459 = scalar_lea.vmem [#allocation2], %s458
        %p460 = pneg %p54
        %p461 = pneg %p51
        %s462 = sand.u32 %s33, 1
        %s463 = scalar_lea.sflag [#allocation6], %s462
        %s464 = sand.u32 %s67, 1
        %s465 = smul.addr %s464, 64
        %s466 = scalar_lea.vmem [#allocation5], %s465
        %p467 = pneg %p80
        %p468 = pneg %p77
        %s469 = sand.u32 %s33, 1
        %s470 = scalar_lea.sflag [#allocation6], %s469
        %s471 = sand.u32 %s93, 1
        %s472 = smul.addr %s471, 2
        %s473 = scalar_lea.vmem [#allocation7], %s472
        %p474 = pneg %p106
        %p475 = pneg %p103
        %s476 = sand.u32 %s33, 1
        %s477 = scalar_lea.sflag [#allocation9], %s476
        %s478 = sand.u32 %s119, 1
        %s479 = smul.addr %s478, 2
        %s480 = scalar_lea.vmem [#allocation8], %s479
        %p481 = pneg %p132
        %p482 = pneg %p129
        %s483 = sand.u32 %s33, 1
        %s484 = scalar_lea.sflag [#allocation9], %s483
        %s485 = sand.u32 %s145, 1
        %s486 = smul.addr %s485, 256
        %s487 = scalar_lea.vmem [#allocation10], %s486
        %p488 = pneg %p158
        %p489 = pneg %p155
        %s490 = sand.u32 %s33, 1
        %s491 = scalar_lea.sflag [#allocation12], %s490
        %s492 = sand.u32 %s171, 1
        %s493 = scalar_lea.vmem [#allocation11], %s492
        %p494 = pneg %p184
        %p495 = pneg %p181
        %s496 = sand.u32 %s33, 1
        %s497 = scalar_lea.sflag [#allocation12], %s496
        %s498 = sand.u32 %s197, 1
        %s499 = scalar_lea.vmem [#allocation13], %s498
        %p500 = pneg %p210
        %p501 = pneg %p207
        %p502 = pneg %p236
        %p503 = pneg %p233
        %s504 = sand.u32 %s223, 1
        %s505 = scalar_lea.sflag [#allocation4], %s504
        %s506 = sand.u32 %s223, 1
        %s507 = smul.addr %s506, 8
        %s508 = scalar_lea.vmem [#allocation14], %s507
        %v509 = vld [vmem:[%s398] sm:$0xff]
        %v510 = vld [vmem:[%s407] sm:$0xff]
        %v511 = vld [vmem:[%s407 + $0x8] sm:$0xff]
        %v512 = vld [vmem:[%s407 + $0x10] sm:$0xff]
        %v513 = vld [vmem:[%s407 + $0x18] sm:$0xff]
        %v514 = vld [vmem:[%s407 + $0x20] sm:$0xff]
        %v515 = vld [vmem:[%s407 + $0x28] sm:$0xff]
        %v516 = vld [vmem:[%s407 + $0x30] sm:$0xff]
        %v517 = vld [vmem:[%s407 + $0x38] sm:$0xff]
        %vm518 = vcmask 261120
        %v520 = vsel %vm518, %v509, 0
        %522 = vmatprep.subr.mxu0 %v511
        %523 = vmatpush1.msra.mxu0 %v510
        %524 = vmatprep.subr.mxu0 %v513
        %525 = vmatpush1.msra.mxu0 %v512
        %526 = vmatprep.subr.mxu0 %v515
        %527 = vmatpush1.msra.mxu0 %v514
        %528 = vmatprep.subr.mxu0 %v517
        %529 = vmatpush1.msra.mxu0 %v516
        %530 = vmatprep.subr.mxu0 0.0
        %531 = vmatpush1.msra.mxu0 0.0
        %532 = vmatprep.subr.mxu0 0.0
        %533 = vmatpush1.msra.mxu0 0.0
        %534 = vmatprep.subr.mxu0 0.0
        %535 = vmatpush1.msra.mxu0 0.0
        %536 = vmatprep.subr.mxu0 0.0
        %537 = vmatpush1.msra.mxu0 0.0
        %538 = vmatprep.subr.mxu0 0.0
        %539 = vmatpush1.msra.mxu0 0.0
        %540 = vmatprep.subr.mxu0 0.0
        %541 = vmatpush1.msra.mxu0 0.0
        %542 = vmatprep.subr.mxu0 0.0
        %543 = vmatpush1.msra.mxu0 0.0
        %544 = vmatprep.subr.mxu0 0.0
        %545 = vmatpush1.msra.mxu0 0.0
        %546 = vmatprep.subr.mxu0 0.0
        %547 = vmatpush1.msra.mxu0 0.0
        %548 = vmatprep.subr.mxu0 0.0
        %549 = vmatpush1.msra.mxu0 0.0
        %550 = vmatprep.subr.mxu0 0.0
        %551 = vmatpush1.msra.mxu0 0.0
        %552 = vmatprep.subr.mxu0 0.0
        %553 = vmatpush1.msra.mxu0 0.0
        %554 = vmatprep.subr.mxu0 0.0
        %555 = vmatpush1.msra.mxu0 0.0
        %556 = vmatprep.subr.mxu0 0.0
        %557 = vmatpush1.msra.mxu0 0.0
        %558 = vmatprep.subr.mxu0 0.0
        %559 = vmatpush1.msra.mxu0 0.0
        %560 = vmatprep.subr.mxu0 0.0
        %561 = vmatpush1.msra.mxu0 0.0
        %562 = vmatprep.subr.mxu0 0.0
        %563 = vmatpush1.msra.mxu0 0.0
        %564 = vmatprep.subr.mxu0 0.0
        %565 = vmatpush1.msra.mxu0 0.0
        %566 = vmatprep.subr.mxu0 0.0
        %567 = vmatpush1.msra.mxu0 0.0
        %568 = vmatprep.subr.mxu0 0.0
        %569 = vmatpush1.msra.mxu0 0.0
        %570 = vmatprep.subr.mxu0 0.0
        %571 = vmatpush1.msra.mxu0 0.0
        %572 = vmatprep.subr.mxu0 0.0
        %573 = vmatpush1.msra.mxu0 0.0
        %574 = vmatprep.subr.mxu0 0.0
        %575 = vmatpush1.msra.mxu0 0.0
        %576 = vmatprep.subr.mxu0 0.0
        %577 = vmatpush1.msra.mxu0 0.0
        %578 = vmatprep.subr.mxu0 0.0
        %579 = vmatpush1.msra.mxu0 0.0
        %580 = vmatprep.subr.mxu0 0.0
        %581 = vmatpush1.msra.mxu0 0.0
        %582 = vmatprep.subr.mxu0 0.0
        %583 = vmatpush1.msra.mxu0 0.0
        %584 = vmatprep.subr.mxu0 0.0
        %585 = vmatpush1.msra.mxu0 0.0
        %586 = vmatprep.mubr.f32.mxu0 0.0
        %587 = vmatmul.mubr.f32.gmra.mrb[0].mxu0 %v520
        %v588 = vpop.f32.mrb[0].mxu0
        %v589 = vadd.f32 0.0, %v588
        %v590 = vpop.f32.mrb[0].mxu0
        %v591 = vadd.f32 0.0, %v590
        %592 = vdwg.mxu0
        %v593 = vld [vmem:[%s416] sm:$0x3]
        %v594 = vld [vmem:[%s425] sm:$0x3]
        %v595 = vrot.slane %v589, 4
        %v596 = vadd.f32 %v589, %v595
        %v597 = vrot.slane %v596, 2
        %v598 = vadd.f32 %v596, %v597
        %v599 = vrot.slane %v598, 1
        %v600 = vadd.f32 %v598, %v599
        %v601 = vrot.slane %v591, 4
        %v602 = vadd.f32 %v591, %v601
        %v603 = vrot.slane %v602, 2
        %v604 = vadd.f32 %v602, %v603
        %v605 = vrot.slane %v604, 1
        %v606 = vadd.f32 %v604, %v605
        %v607 = vrcp.pop 8.0
        %v608 = vmul.f32 %v600, %v607
        %v609 = vmul.f32 %v606, %v607
        %v610 = vsub.f32 %v589, %v608
        %v611 = vsub.f32 %v591, %v609
        %v612 = vmul.f32 %v610, %v610
        %v613 = vmul.f32 %v611, %v611
        %v614 = vrot.slane %v612, 4
        %v615 = vadd.f32 %v612, %v614
        %v616 = vrot.slane %v615, 2
        %v617 = vadd.f32 %v615, %v616
        %v618 = vrot.slane %v617, 1
        %v619 = vadd.f32 %v617, %v618
        %v620 = vrot.slane %v613, 4
        %v621 = vadd.f32 %v613, %v620
        %v622 = vrot.slane %v621, 2
        %v623 = vadd.f32 %v621, %v622
        %v624 = vrot.slane %v623, 1
        %v625 = vadd.f32 %v623, %v624
        %v626 = vmul.f32 %v619, %v607
        %v627 = vmul.f32 %v625, %v607
        %v628 = vadd.f32 %v626, 1e-05
        %v629 = vadd.f32 %v627, 1e-05
        %v630 = vrsqrt.pop %v628
        %v631 = vrsqrt.pop %v629
        %v634 = vcombine.low %v630, %v631
        %v636 = vunpack.c.l.s4 1966171168
        %v637 = vunpack.c.0.s8 %v636
        %v638 = vlaneseq
        %v639 = vshrl.u32 %v638, 7
        %v640 = vsub.s32 %v637, %v639
        %v641 = vrot.slane %v634, %v640
        %v643 = vunpack.c.l.s4 1966171168
        %v644 = vunpack.c.0.s8 %v643
        %v645 = vlaneseq
        %v646 = vshrl.u32 %v645, 7
        %v647 = vsub.s32 %v644, %v646
        %v648 = vrot.slane %v641, %v647
        %v650 = vmul.f32 %v593, %v648
        %v652 = vlaneseq
        %v653 = vshrl.u32 %v652, 7
        %v654 = vsub.s32 0, %v653
        %v655 = vrot.slane %v650, %v654
        %v656 = vlaneseq
        %v657 = vshrl.u32 %v656, 7
        %v658 = vsub.s32 1, %v657
        %v659 = vrot.slane %v650, %v658
        %v662 = vmul.f32 %v608, %v655
        %v663 = vmul.f32 %v609, %v659
        %v666 = vcombine.low %v662, %v663
        %v668 = vunpack.c.l.s4 1966171168
        %v669 = vunpack.c.0.s8 %v668
        %v670 = vlaneseq
        %v671 = vshrl.u32 %v670, 7
        %v672 = vsub.s32 %v669, %v671
        %v673 = vrot.slane %v666, %v672
        %v675 = vunpack.c.l.s4 1966171168
        %v676 = vunpack.c.0.s8 %v675
        %v677 = vlaneseq
        %v678 = vshrl.u32 %v677, 7
        %v679 = vsub.s32 %v676, %v678
        %v680 = vrot.slane %v673, %v679
        %v682 = vsub.f32 %v594, %v680
        %v683 = vmul.f32 %v589, %v655
        %v684 = vmul.f32 %v591, %v659
        %v686 = vlaneseq
        %v687 = vshrl.u32 %v686, 7
        %v688 = vsub.s32 0, %v687
        %v689 = vrot.slane %v682, %v688
        %v690 = vlaneseq
        %v691 = vshrl.u32 %v690, 7
        %v692 = vsub.s32 1, %v691
        %v693 = vrot.slane %v682, %v692
        %v696 = vadd.f32 %v683, %v689
        %v697 = vadd.f32 %v684, %v693
        %v698 = vmax.f32 %v696, 0.0
        %v699 = vmax.f32 %v697, 0.0
        %v700 = vld [vmem:[%s434] sm:$0xff]
        %v701 = vld [vmem:[%s434 + $0x8] sm:$0xff]
        %v702 = vld [vmem:[%s434 + $0x10] sm:$0xff]
        %v703 = vld [vmem:[%s434 + $0x18] sm:$0xff]
        %v704 = vld [vmem:[%s434 + $0x20] sm:$0xff]
        %v705 = vld [vmem:[%s434 + $0x28] sm:$0xff]
        %v706 = vld [vmem:[%s434 + $0x30] sm:$0xff]
        %v707 = vld [vmem:[%s434 + $0x38] sm:$0xff]
        %v708 = vld [vmem:[%s434 + $0x40] sm:$0xff]
        %v709 = vld [vmem:[%s434 + $0x48] sm:$0xff]
        %v710 = vld [vmem:[%s434 + $0x50] sm:$0xff]
        %v711 = vld [vmem:[%s434 + $0x58] sm:$0xff]
        %v712 = vld [vmem:[%s434 + $0x60] sm:$0xff]
        %v713 = vld [vmem:[%s434 + $0x68] sm:$0xff]
        %v714 = vld [vmem:[%s434 + $0x70] sm:$0xff]
        %v715 = vld [vmem:[%s434 + $0x78] sm:$0xff]
        %v716 = vld [vmem:[%s434 + $0x80] sm:$0xff]
        %v717 = vld [vmem:[%s434 + $0x88] sm:$0xff]
        %v718 = vld [vmem:[%s434 + $0x90] sm:$0xff]
        %v719 = vld [vmem:[%s434 + $0x98] sm:$0xff]
        %v720 = vld [vmem:[%s434 + $0xa0] sm:$0xff]
        %v721 = vld [vmem:[%s434 + $0xa8] sm:$0xff]
        %v722 = vld [vmem:[%s434 + $0xb0] sm:$0xff]
        %v723 = vld [vmem:[%s434 + $0xb8] sm:$0xff]
        %v724 = vld [vmem:[%s434 + $0xc0] sm:$0xff]
        %v725 = vld [vmem:[%s434 + $0xc8] sm:$0xff]
        %v726 = vld [vmem:[%s434 + $0xd0] sm:$0xff]
        %v727 = vld [vmem:[%s434 + $0xd8] sm:$0xff]
        %v728 = vld [vmem:[%s434 + $0xe0] sm:$0xff]
        %v729 = vld [vmem:[%s434 + $0xe8] sm:$0xff]
        %v730 = vld [vmem:[%s434 + $0xf0] sm:$0xff]
        %v731 = vld [vmem:[%s434 + $0xf8] sm:$0xff]
        %732 = vmatprep.subr.mxu0 0.0
        %733 = vmatpush1.msra.mxu0 %v700
        %734 = vmatprep.subr.mxu0 0.0
        %735 = vmatpush1.msra.mxu0 %v701
        %736 = vmatprep.subr.mxu0 0.0
        %737 = vmatpush1.msra.mxu0 %v702
        %738 = vmatprep.subr.mxu0 0.0
        %739 = vmatpush1.msra.mxu0 %v703
        %740 = vmatprep.subr.mxu0 0.0
        %741 = vmatpush1.msra.mxu0 %v704
        %742 = vmatprep.subr.mxu0 0.0
        %743 = vmatpush1.msra.mxu0 %v705
        %744 = vmatprep.subr.mxu0 0.0
        %745 = vmatpush1.msra.mxu0 %v706
        %746 = vmatprep.subr.mxu0 0.0
        %747 = vmatpush1.msra.mxu0 %v707
        %748 = vmatprep.subr.mxu0 0.0
        %749 = vmatpush1.msra.mxu0 %v708
        %750 = vmatprep.subr.mxu0 0.0
        %751 = vmatpush1.msra.mxu0 %v709
        %752 = vmatprep.subr.mxu0 0.0
        %753 = vmatpush1.msra.mxu0 %v710
        %754 = vmatprep.subr.mxu0 0.0
        %755 = vmatpush1.msra.mxu0 %v711
        %756 = vmatprep.subr.mxu0 0.0
        %757 = vmatpush1.msra.mxu0 %v712
        %758 = vmatprep.subr.mxu0 0.0
        %759 = vmatpush1.msra.mxu0 %v713
        %760 = vmatprep.subr.mxu0 0.0
        %761 = vmatpush1.msra.mxu0 %v714
        %762 = vmatprep.subr.mxu0 0.0
        %763 = vmatpush1.msra.mxu0 %v715
        %764 = vmatprep.subr.mxu0 0.0
        %765 = vmatpush1.msra.mxu0 %v716
        %766 = vmatprep.subr.mxu0 0.0
        %767 = vmatpush1.msra.mxu0 %v717
        %768 = vmatprep.subr.mxu0 0.0
        %769 = vmatpush1.msra.mxu0 %v718
        %770 = vmatprep.subr.mxu0 0.0
        %771 = vmatpush1.msra.mxu0 %v719
        %772 = vmatprep.subr.mxu0 0.0
        %773 = vmatpush1.msra.mxu0 %v720
        %774 = vmatprep.subr.mxu0 0.0
        %775 = vmatpush1.msra.mxu0 %v721
        %776 = vmatprep.subr.mxu0 0.0
        %777 = vmatpush1.msra.mxu0 %v722
        %778 = vmatprep.subr.mxu0 0.0
        %779 = vmatpush1.msra.mxu0 %v723
        %780 = vmatprep.subr.mxu0 0.0
        %781 = vmatpush1.msra.mxu0 %v724
        %782 = vmatprep.subr.mxu0 0.0
        %783 = vmatpush1.msra.mxu0 %v725
        %784 = vmatprep.subr.mxu0 0.0
        %785 = vmatpush1.msra.mxu0 %v726
        %786 = vmatprep.subr.mxu0 0.0
        %787 = vmatpush1.msra.mxu0 %v727
        %788 = vmatprep.subr.mxu0 0.0
        %789 = vmatpush1.msra.mxu0 %v728
        %790 = vmatprep.subr.mxu0 0.0
        %791 = vmatpush1.msra.mxu0 %v729
        %792 = vmatprep.subr.mxu0 0.0
        %793 = vmatpush1.msra.mxu0 %v730
        %794 = vmatprep.subr.mxu0 0.0
        %795 = vmatpush1.msra.mxu0 %v731
        %796 = vmatprep.mubr.f32.mxu0 %v699
        %797 = vmatmul.mubr.f32.gmra.mrb[0].mxu0 %v698
        %v798 = vpop.f32.mrb[0].mxu0
        %v799 = vadd.f32 0.0, %v798
        %v800 = vpop.f32.mrb[0].mxu0
        %801 = vdwg.mxu0
        %v802 = vld [vmem:[%s442] sm:$0x1]
        %v803 = vld [vmem:[%s450] sm:$0x1]
        %v804 = vrot.slane %v799, 4
        %v805 = vadd.f32 %v799, %v804
        %v806 = vrot.slane %v805, 2
        %v807 = vadd.f32 %v805, %v806
        %v808 = vrot.slane %v807, 1
        %v809 = vadd.f32 %v807, %v808
        %v810 = vmul.f32 %v809, %v607
        %v811 = vsub.f32 %v799, %v810
        %v812 = vmul.f32 %v811, %v811
        %v813 = vrot.slane %v812, 4
        %v814 = vadd.f32 %v812, %v813
        %v815 = vrot.slane %v814, 2
        %v816 = vadd.f32 %v814, %v815
        %v817 = vrot.slane %v816, 1
        %v818 = vadd.f32 %v816, %v817
        %v819 = vmul.f32 %v818, %v607
        %v820 = vadd.f32 %v819, 1e-05
        %v821 = vrsqrt.pop %v820
        %v822 = vmul.f32 %v802, %v821
        %v823 = vmul.f32 %v810, %v822
        %v824 = vsub.f32 %v803, %v823
        %v826 = vlaneseq
        %v827 = vshrl.u32 %v826, 7
        %v828 = vsub.s32 0, %v827
        %v829 = vrot.slane %v822, %v828
        %v831 = vmul.f32 %v799, %v829
        %v833 = vlaneseq
        %v834 = vshrl.u32 %v833, 7
        %v835 = vsub.s32 0, %v834
        %v836 = vrot.slane %v824, %v835
        %v838 = vadd.f32 %v831, %v836
        %v839 = vmul.f32 %v838, %v838
        %840 = vadd.xlane.f32.xlu0 %v839
        %v841 = vpop.xlane.xlu0 %840
        %v842 = vadd.f32 %v841, 1e-12
        %v843 = vrsqrt.pop %v842
        %v844 = vmul.f32 %v838, %v843
        %845 = vst [vmem:[%s508] sm:$0xff] %v844
        %s846 = sand.u32 %s223, 1
        %s847 = scalar_lea.sflag [#allocation4], %s846
        %s848 = sand.u32 %s223, 1
        %s849 = smul.addr %s848, 8
        %s850 = scalar_lea.vmem [#allocation14], %s849
        // Predicated region
        $region77: #{discriminator_forward.2} parent=47 // pred_check
          %p851 = pneg %p233
        $region78: #{discriminator_forward.2} parent=47 // pred_check_branch
          %853 = sbr.rel (%p851) target = $region80
        $region79: #{discriminator_forward.2} parent=47 // pred_region
          %s855 = ssub.s32 128, 128
          %856 = vsyncadd %s847, %s855
          %s857 = smul.addr %s33, 128
          %s858 = scalar_lea.hbm %s7, %s857
          %s860 = sshll.u32 %s850, 4
          %s861 = int_to_ptr.vmem [resolvable:$true] %s860
          %863 = dma.vmem_to_hbm [thread:$0]  %s861, 128, %s858, %s847
        $region80: #{discriminator_forward.2} parent=47 // pred_fallthru
          _
      $region48: #{discriminator_forward.2} parent=5 // pred_fallthru
        _
      %p864 = scmp.le.s32.totalorder 2, %s28
      // Predicated region
      $region81: #{discriminator_forward.2} parent=5 // pred_check
        %p865 = pneg %p864
      $region82: #{discriminator_forward.2} parent=5 // pred_check_branch
        %867 = sbr.rel (%p865) target = $region84
      $region83: #{discriminator_forward.2} parent=5 // pred_region
        %s868 = ssub.s32 %s28, 2
        // Predicated region
        $region85: #{discriminator_forward.2} parent=83 // pred_check
          %p869 = pneg %p239
        $region86: #{discriminator_forward.2} parent=83 // pred_check_branch
          %871 = sbr.rel (%p869) target = $region88
        $region87: #{discriminator_forward.2} parent=83 // pred_region
          %s872 = sand.u32 %s224, 1
          %s873 = scalar_lea.sflag [#allocation4], %s872
          %s874 = sand.u32 %s224, 1
          %s875 = smul.addr %s874, 8
          %s876 = scalar_lea.vmem [#allocation14], %s875
          %877 = dma.done %s873, 128
        $region88: #{discriminator_forward.2} parent=83 // pred_fallthru
          _
      $region84: #{discriminator_forward.2} parent=5 // pred_fallthru
        _
    $region6: #{discriminator_forward.2} parent=1 // loop_footer
      %s32 = sadd.s32 1, %s28
    $region7: #{discriminator_forward.2} parent=1 // loop_footer_branch
      %27 = sbr.rel target = $region3
    $region8: #{discriminator_forward.2} parent=1 // loop_exit
      _
    %878 = vsyncpa [#allocation3], 1
    %s879 = scalar_lea.sflag [#allocation3], 1
    %880 = vsyncpa %s879, 1
    %881 = vsyncpa [#allocation6], 1
    %s882 = scalar_lea.sflag [#allocation6], 1
    %883 = vsyncpa %s882, 1
    %884 = vsyncpa [#allocation9], 1
    %s885 = scalar_lea.sflag [#allocation9], 1
    %886 = vsyncpa %s885, 1
    %887 = vsyncpa [#allocation12], 1
    %s888 = scalar_lea.sflag [#allocation12], 1
    %889 = vsyncpa %s888, 1
    %890 = vsyncpa [#allocation4], 1
    %s891 = scalar_lea.sflag [#allocation4], 1
    %892 = vsyncpa %s891, 1

</llo_original>
